<compile_context>
chip_gen: v7x
topology: tpu7x:2x2x1
jax: 0.10.0
libtpu: 0.0.40
codegen_flags: <defaults>
</compile_context>

<pallas_src>
import functools

import jax
import jax.numpy as jnp
from jax.experimental import pallas as pl
from jax.experimental.pallas import tpu as pltpu


def output_head_kernel(x_ref, w_ref, b_ref, o_ref):
    # x_ref: (B_pad, H) bf16   -- resident across all vocab tiles
    # w_ref: (H, tn)   bf16    -- one streamed, double-buffered weight tile
    # b_ref: (1, tn)   f32     -- one bias tile
    # o_ref: (B_pad, tn)       -- one lane-dense output tile
    acc = jnp.dot(x_ref[...], w_ref[...],
                  preferred_element_type=jnp.float32)      # MXU, f32 accumulate
    o_ref[...] = (acc + b_ref[...]).astype(o_ref.dtype)    # f32 VPU epilogue


def _pick_vocab_tile(V, H, *, w_bytes=2, max_tn=4096,
                     vmem_budget=40 * 1024 * 1024):
    """Largest vocab tile that is a multiple of 128 and whose double-buffered
    bf16 weight tile fits a conservative VMEM budget (safe on v7x's 64 MiB as
    well as v5e/v6e's 128 MiB).  V is padded up to a multiple of the tile in
    the wrapper, so no divisibility constraint is needed here."""
    tn = min(max_tn, max(128, ((V + 127) // 128) * 128))
    tn = (tn // 128) * 128
    while tn > 128 and 2 * H * tn * w_bytes > vmem_budget:
        tn -= 128
    return tn


@functools.partial(jax.jit, static_argnames=("tn",))
def output_wrapper_forward(x, w, b, *, tn=None):
    """OutputWarpper(Linear(H->V)) forward:  x[:, -1, :] @ w + b.

    x: (B, S, H), w: (H, V) [torch weight.T], b: (1, V)  ->  (B, V)
    """
    B, S, H = x.shape
    V = w.shape[1]
    out_dtype = x.dtype

    # 1) Last-token slice in the wrapper: only (B, H) ever reaches the kernel.
    x_last = jax.lax.slice_in_dim(x, S - 1, S, axis=1)[:, 0, :]       # (B, H)

    # 2) Pad batch to a sublane-friendly multiple of 8 (unmasked stores).
    B_pad = max(8, ((B + 7) // 8) * 8)
    if B_pad != B:
        x_last = jnp.pad(x_last, ((0, B_pad - B), (0, 0)))

    # 3) Pick a lane-dense vocab tile and pad V up to a multiple of it, so any
    #    vocab size works and every output tile is a full (B_pad, tn) slab.
    if tn is None:
        tn = _pick_vocab_tile(V, H)
    assert tn % 128 == 0, "vocab tile must be a multiple of 128 lanes"
    V_pad = ((V + tn - 1) // tn) * tn

    # 4) Stream activations/weights as bf16; keep bias/epilogue in f32.
    x_bf16 = x_last.astype(jnp.bfloat16)
    w_bf16 = w.astype(jnp.bfloat16)
    b_f32 = b.astype(jnp.float32)
    if V_pad != V:
        w_bf16 = jnp.pad(w_bf16, ((0, 0), (0, V_pad - V)))
        b_f32 = jnp.pad(b_f32, ((0, 0), (0, V_pad - V)))

    grid = (V_pad // tn,)

    cost = pl.CostEstimate(
        flops=2 * B_pad * H * V_pad,
        transcendentals=0,
        bytes_accessed=(H * V_pad * 2                                 # bf16 W
                        + B_pad * H * 2                               # bf16 x
                        + V_pad * 4                                   # f32 bias
                        + B_pad * V_pad * jnp.dtype(out_dtype).itemsize))

    out_padded = pl.pallas_call(
        output_head_kernel,
        out_shape=jax.ShapeDtypeStruct((B_pad, V_pad), out_dtype),
        grid=grid,
        in_specs=[
            pl.BlockSpec((B_pad, H), lambda j: (0, 0)),   # x_last: resident
            pl.BlockSpec((H, tn), lambda j: (0, j)),      # weight: streamed tiles
            pl.BlockSpec((1, tn), lambda j: (0, j)),      # bias tile
        ],
        out_specs=pl.BlockSpec((B_pad, tn), lambda j: (0, j)),
        compiler_params=pltpu.CompilerParams(
            dimension_semantics=("parallel",),            # vocab tiles -> both TCs on v7x
            vmem_limit_bytes=48 * 1024 * 1024,
        ),
        cost_estimate=cost,
    )(x_bf16, w_bf16, b_f32)

    return out_padded[:B, :V]


if __name__ == "__main__":
    # Small, deterministic shapes consistent with the forward:
    # x: [batch, seq, hidden]; wrapped module: Linear(hidden -> vocab).
    B, S, H, V = 4, 8, 128, 512

    key = jax.random.PRNGKey(0)
    kx, kw, kb = jax.random.split(key, 3)
    x = jax.random.normal(kx, (B, S, H), dtype=jnp.float32)
    w = jax.random.normal(kw, (H, V), dtype=jnp.float32) * (1.0 / jnp.sqrt(H))
    b = jax.random.normal(kb, (1, V), dtype=jnp.float32) * 0.01

    # tn=128 exercises the multi-tile vocab grid (grid=(4,)) at demo size;
    # production calls can omit tn and let _pick_vocab_tile choose (1-4K).
    out = output_wrapper_forward(x, w, b, tn=128)
    out = jax.block_until_ready(out)
    assert out.shape == (B, V)
    assert out.dtype == x.dtype

    # Reference 1 (exact semantics, f32): loose tolerance for bf16 weight stream.
    ref_f32 = x[:, -1, :] @ w + b
    assert jnp.allclose(out, ref_f32, atol=5e-2, rtol=5e-2)

    # Reference 2 (bf16-quantized inputs, f32 accumulate): tight tolerance.
    xq = x[:, -1, :].astype(jnp.bfloat16).astype(jnp.float32)
    wq = w.astype(jnp.bfloat16).astype(jnp.float32)
    ref_bf16 = xq @ wq + b
    assert jnp.allclose(out, ref_bf16, atol=1e-3, rtol=1e-3)

    # Also run the default-tile path once for coverage (single 512-wide tile).
    out2 = jax.block_until_ready(output_wrapper_forward(x, w, b))
    assert jnp.allclose(out2, out, atol=1e-5, rtol=1e-5)

    print("KERNEL_OK")
</pallas_src>

<mosaic_0001>
module attributes {stable_mosaic.version = 11 : i64} {
  func.func @output_head_kernel(%arg0: i32, %arg1: memref<8x128xbf16, #tpu.memory_space<vmem>>, %arg2: memref<128x128xbf16, #tpu.memory_space<vmem>>, %arg3: memref<1x128xf32, #tpu.memory_space<vmem>>, %arg4: memref<8x128xf32, #tpu.memory_space<vmem>>) attributes {dimension_semantics = [#tpu.dimension_semantics<parallel>], iteration_bounds = array<i64: 4>, scalar_prefetch = 0 : i64, scratch_operands = 0 : i64, tpu.core_type = #tpu.core_type<tc>, window_params = [{pipeline_mode = #tpu.pipeline_mode<synchronous>, transform_indices = @transform_0, window_bounds = array<i64: 8, 128>}, {transform_indices = @transform_1, window_bounds = array<i64: 128, 128>}, {transform_indices = @transform_2, window_bounds = array<i64: 1, 128>}, {transform_indices = @transform_3, window_bounds = array<i64: 8, 128>}]} {
    %c0 = arith.constant 0 : index
    %c0_0 = arith.constant 0 : index
    %0 = vector.load %arg1[%c0, %c0_0] : memref<8x128xbf16, #tpu.memory_space<vmem>>, vector<8x128xbf16>
    %c0_1 = arith.constant 0 : index
    %c0_2 = arith.constant 0 : index
    %1 = vector.load %arg2[%c0_1, %c0_2] : memref<128x128xbf16, #tpu.memory_space<vmem>>, vector<128x128xbf16>
    %cst = arith.constant dense<0.000000e+00> : vector<8x128xf32>
    %2 = tpu.matmul %0, %1, %cst {dimension_numbers = #tpu.dot_dimension_numbers<[1], [0], [0], [1], [0, 0, 1, 1], [], []>} : vector<8x128xbf16>, vector<128x128xbf16>, vector<8x128xf32> -> vector<8x128xf32>
    %c0_3 = arith.constant 0 : index
    %c0_4 = arith.constant 0 : index
    %3 = vector.load %arg3[%c0_3, %c0_4] : memref<1x128xf32, #tpu.memory_space<vmem>>, vector<1x128xf32>
    %4 = vector.broadcast %3 : vector<1x128xf32> to vector<8x128xf32>
    %5 = arith.addf %2, %4 : vector<8x128xf32>
    %c0_5 = arith.constant 0 : index
    %c0_6 = arith.constant 0 : index
    %6 = vector.load %arg4[%c0_5, %c0_6] : memref<8x128xf32, #tpu.memory_space<vmem>>, vector<8x128xf32>
    tpu.vector_store %arg4[%c0_5, %c0_6], %5 {strides = array<i32>} : memref<8x128xf32, #tpu.memory_space<vmem>>, vector<8x128xf32>,
    return
  }
  func.func @transform_0(%arg0: i32) -> (i32, i32) {
    %c0_i32 = arith.constant 0 : i32
    %c0_i32_0 = arith.constant 0 : i32
    %c0_i32_1 = arith.constant 0 : i32
    return %c0_i32, %c0_i32_0 : i32, i32
  }
  func.func @transform_1(%arg0: i32) -> (i32, i32) {
    %c0_i32 = arith.constant 0 : i32
    %c0_i32_0 = arith.constant 0 : i32
    return %c0_i32, %arg0 : i32, i32
  }
  func.func @transform_2(%arg0: i32) -> (i32, i32) {
    %c0_i32 = arith.constant 0 : i32
    %c0_i32_0 = arith.constant 0 : i32
    return %c0_i32, %arg0 : i32, i32
  }
  func.func @transform_3(%arg0: i32) -> (i32, i32) {
    %c0_i32 = arith.constant 0 : i32
    %c0_i32_0 = arith.constant 0 : i32
    return %c0_i32, %arg0 : i32, i32
  }
}

</mosaic_0001>

<llo_original>
// kernel: output_wrapper_forward.1
$region0: #{output_wrapper_forward.1}
  #allocation0 [shape = 'u32[]', space=smem, size = 0x4, offset = 0x4, fixed_abs, tag = 'smem constant byte address 0x4 - core index']
  #allocation1 [shape = 'u32[144,128]{1,0:T(1,128)}', space=vmem, size = 0x12000, scoped, tag = 'internal scratch']
  %s0 = inlined_call_operand.vmem [shape: bf16[8,128], index: 0, kind: input, shape index: {}]
  %s1 = inlined_call_operand.vmem [shape: bf16[128,512], index: 1, kind: input, shape index: {}]
  %s2 = inlined_call_operand.vmem [shape: f32[1,512], index: 2, kind: input, shape index: {}]
  %s3 = inlined_call_operand.vmem [shape: f32[8,512], index: 3, kind: output, shape index: {}]
  %s4 = sld [smem:[#allocation0]]
  $region86: #{output_wrapper_forward.1} parent=0
    _
  %s6 = ssub.s32 1, %s4
  %s7 = scalar_select 0, %s6, %s4
  $region1: #{output_wrapper_forward.1} parent=0
    #allocation2 [shape = 'u8[65536]{0}', space=vmem, size = 0x10000, scoped, tag = 'input window, operand 1']
    loop: start=0, step=1, limit=6
    $region2: #{output_wrapper_forward.1} parent=1 // loop_pre_header
      _
    $region3: #{output_wrapper_forward.1} parent=1 // loop_header
      %s9 = sphi 0, %s13
      %p10 = scmp.ge.s32.totalorder %s9, 6
      %s17 = sphi 0, %s17
      %s19 = sphi 0, %s17
      %s20 = sphi 0, %s19
      %s34 = sphi 0, %s20
      %s40 = sphi 0, %s42
      %s43 = sphi 0, %s40
      %s44 = sphi 0, %s43
      %s60 = sphi 0, %s44
      %s66 = sphi 0, %s68
      %s69 = sphi 0, %s66
      %s70 = sphi 0, %s69
      %s86 = sphi 0, %s70
      %s92 = sphi 0, %s94
      %s95 = sphi 0, %s92
      %s96 = sphi 0, %s95
      %s112 = sphi 0, %s96
    $region4: #{output_wrapper_forward.1} parent=1 // loop_header_branch
      %12 = sbr.rel (%p10) target = $region8
    $region5: #{output_wrapper_forward.1} parent=1 // loop_body
      %s14 = ssub.s32 %s9, 1
      %s15 = ssub.s32 %s9, 2
      %s16 = sadd.s32 %s9, 1
      %s18 = sadd.s32 %s17, 1
      %p21 = scmp.eq.s32.totalorder %s9, 3
      %p22 = scmp.ne.s32.totalorder %s17, %s19
      %p23 = scmp.eq.s32.totalorder %s9, 0
      %p24 = por %p22, %p23
      %p25 = scmp.ne.s32.totalorder %s17, %s19
      %p26 = scmp.eq.s32.totalorder %s14, 3
      %p27 = por %p25, %p26
      %p28 = scmp.ne.s32.totalorder %s19, %s20
      %p29 = scmp.eq.s32.totalorder %s14, 0
      %p30 = por %p28, %p29
      %p31 = scmp.ne.s32.totalorder %s19, %s20
      %p32 = scmp.eq.s32.totalorder %s15, 3
      %p33 = por %p31, %p32
      %p35 = scmp.ne.s32.totalorder %s20, %s34
      %p36 = scmp.eq.s32.totalorder %s15, 0
      %p37 = por %p35, %p36
      %s38 = ssub.s32 %s9, %s16
      %p39 = scmp.eq.s32.totalorder %s38, 0
      %s41 = sadd.s32 %s40, 1
      %s42 = scalar_select %p39, %s40, %s41
      %p45 = pneg %p39
      %p46 = scmp.eq.s32.totalorder %s9, 3
      %p47 = por %p45, %p46
      %p48 = scmp.ne.s32.totalorder %s40, %s43
      %p49 = scmp.eq.s32.totalorder %s9, 0
      %p50 = por %p48, %p49
      %p51 = scmp.ne.s32.totalorder %s40, %s43
      %p52 = scmp.eq.s32.totalorder %s14, 3
      %p53 = por %p51, %p52
      %p54 = scmp.ne.s32.totalorder %s43, %s44
      %p55 = scmp.eq.s32.totalorder %s14, 0
      %p56 = por %p54, %p55
      %p57 = scmp.ne.s32.totalorder %s43, %s44
      %p58 = scmp.eq.s32.totalorder %s15, 3
      %p59 = por %p57, %p58
      %p61 = scmp.ne.s32.totalorder %s44, %s60
      %p62 = scmp.eq.s32.totalorder %s15, 0
      %p63 = por %p61, %p62
      %s64 = ssub.s32 %s9, %s16
      %p65 = scmp.eq.s32.totalorder %s64, 0
      %s67 = sadd.s32 %s66, 1
      %s68 = scalar_select %p65, %s66, %s67
      %p71 = pneg %p65
      %p72 = scmp.eq.s32.totalorder %s9, 3
      %p73 = por %p71, %p72
      %p74 = scmp.ne.s32.totalorder %s66, %s69
      %p75 = scmp.eq.s32.totalorder %s9, 0
      %p76 = por %p74, %p75
      %p77 = scmp.ne.s32.totalorder %s66, %s69
      %p78 = scmp.eq.s32.totalorder %s14, 3
      %p79 = por %p77, %p78
      %p80 = scmp.ne.s32.totalorder %s69, %s70
      %p81 = scmp.eq.s32.totalorder %s14, 0
      %p82 = por %p80, %p81
      %p83 = scmp.ne.s32.totalorder %s69, %s70
      %p84 = scmp.eq.s32.totalorder %s15, 3
      %p85 = por %p83, %p84
      %p87 = scmp.ne.s32.totalorder %s70, %s86
      %p88 = scmp.eq.s32.totalorder %s15, 0
      %p89 = por %p87, %p88
      %s90 = ssub.s32 %s9, %s16
      %p91 = scmp.eq.s32.totalorder %s90, 0
      %s93 = sadd.s32 %s92, 1
      %s94 = scalar_select %p91, %s92, %s93
      %p97 = pneg %p91
      %p98 = scmp.eq.s32.totalorder %s9, 3
      %p99 = por %p97, %p98
      %p100 = scmp.ne.s32.totalorder %s92, %s95
      %p101 = scmp.eq.s32.totalorder %s9, 0
      %p102 = por %p100, %p101
      %p103 = scmp.ne.s32.totalorder %s92, %s95
      %p104 = scmp.eq.s32.totalorder %s14, 3
      %p105 = por %p103, %p104
      %p106 = scmp.ne.s32.totalorder %s95, %s96
      %p107 = scmp.eq.s32.totalorder %s14, 0
      %p108 = por %p106, %p107
      %p109 = scmp.ne.s32.totalorder %s95, %s96
      %p110 = scmp.eq.s32.totalorder %s15, 3
      %p111 = por %p109, %p110
      %p113 = scmp.ne.s32.totalorder %s96, %s112
      %p114 = scmp.eq.s32.totalorder %s15, 0
      %p115 = por %p113, %p114
      %p116 = scmp.le.s32.totalorder 1, %s9
      %p117 = scmp.lt.s32.totalorder %s9, 5
      %p118 = pnand %p116, %p117
      %p119 = pneg %p118
      // Predicated region
      $region9: #{output_wrapper_forward.1} parent=5 // pred_check
        _
      $region10: #{output_wrapper_forward.1} parent=5 // pred_check_branch
        %121 = sbr.rel (%p118) target = $region12
      $region11: #{output_wrapper_forward.1} parent=5 // pred_region
        %s122 = ssub.s32 %s9, 1
        // Predicated region
        $region13: #{output_wrapper_forward.1} parent=11 // pred_check
          %p123 = pneg %p30
        $region14: #{output_wrapper_forward.1} parent=11 // pred_check_branch
          %125 = sbr.rel (%p123) target = $region16
        $region15: #{output_wrapper_forward.1} parent=11 // pred_region
          _
        $region16: #{output_wrapper_forward.1} parent=11 // pred_fallthru
          _
      $region12: #{output_wrapper_forward.1} parent=5 // pred_fallthru
        _
      %p126 = scmp.lt.s32.totalorder %s9, 4
      // Predicated region
      $region17: #{output_wrapper_forward.1} parent=5 // pred_check
        %p127 = pneg %p126
      $region18: #{output_wrapper_forward.1} parent=5 // pred_check_branch
        %129 = sbr.rel (%p127) target = $region20
      $region19: #{output_wrapper_forward.1} parent=5 // pred_region
        // Predicated region
        $region21: #{output_wrapper_forward.1} parent=19 // pred_check
          %p130 = pneg %p50
        $region22: #{output_wrapper_forward.1} parent=19 // pred_check_branch
          %132 = sbr.rel (%p130) target = $region24
        $region23: #{output_wrapper_forward.1} parent=19 // pred_region
          %s133 = sand.u32 %s40, 1
          %s134 = sand.u32 %s40, 1
          %s135 = smul.addr %s134, 64
          %s136 = scalar_lea.vmem [#allocation2], %s135
          %s137 = smul.addr %s9, 4
          %s138 = scalar_lea.vmem %s1, %s137
          // Predicated region
          $region25: #{output_wrapper_forward.1} parent=23 // pred_check
            _
          $region26: #{output_wrapper_forward.1} parent=23 // pred_check_branch
            %140 = sbr.rel (0) target = $region28
          $region27: #{output_wrapper_forward.1} parent=23 // pred_region
            // Predicated region
            $region29: #{output_wrapper_forward.1} parent=27 // pred_check
              _
            $region30: #{output_wrapper_forward.1} parent=27 // pred_check_branch
              %142 = sbr.rel target = $region32
            $region31: #{output_wrapper_forward.1} parent=27 // pred_region
              // Predicated region
              $region44: #{output_wrapper_forward.1} parent=31 // pred_check
                _
              $region45: #{output_wrapper_forward.1} parent=31 // pred_check_branch
                %187 = sbr.rel (0) target = $region47
              $region46: #{output_wrapper_forward.1} parent=31 // pred_region
                loop: start=0, step=1, limit=1
                $region48: #{output_wrapper_forward.1} parent=46 // loop_pre_header
                  _
                $region49: #{output_wrapper_forward.1} parent=46 // loop_header
                  %s189 = sphi 0, %s193
                  %p190 = scmp.ge.s32.totalorder %s189, 1
                  %s194 = sphi %s138, %s138
                  %s195 = sphi %s136, %s136
                $region50: #{output_wrapper_forward.1} parent=46 // loop_header_branch
                  %192 = sbr.rel (%p190) target = $region54
                $region51: #{output_wrapper_forward.1} parent=46 // loop_body
                  _
                $region52: #{output_wrapper_forward.1} parent=46 // loop_footer
                  %s193 = sadd.s32 1, %s189
                $region53: #{output_wrapper_forward.1} parent=46 // loop_footer_branch
                  %188 = sbr.rel target = $region49
                $region54: #{output_wrapper_forward.1} parent=46 // loop_exit
                  _
                loop: start=0, step=1, limit=1
                $region55: #{output_wrapper_forward.1} parent=46 // loop_pre_header
                  _
                $region56: #{output_wrapper_forward.1} parent=46 // loop_header
                  %s198 = sphi 0, %s202
                  %p199 = scmp.ge.s32.totalorder %s198, 1
                  %s203 = sphi %s138, %s138
                  %s204 = sphi %s136, %s136
                $region57: #{output_wrapper_forward.1} parent=46 // loop_header_branch
                  %201 = sbr.rel (%p199) target = $region61
                $region58: #{output_wrapper_forward.1} parent=46 // loop_body
                  %v205 = vld [vmem:[%s203] sm:$0xf]
                  %206 = vst [vmem:[%s204] sm:$0xf] %v205
                  %v207 = vld [vmem:[%s203 + $0x10] sm:$0xf]
                  %208 = vst [vmem:[%s204 + $0x4] sm:$0xf] %v207
                  %v209 = vld [vmem:[%s203 + $0x20] sm:$0xf]
                  %210 = vst [vmem:[%s204 + $0x8] sm:$0xf] %v209
                  %v211 = vld [vmem:[%s203 + $0x30] sm:$0xf]
                  %212 = vst [vmem:[%s204 + $0xc] sm:$0xf] %v211
                  %v213 = vld [vmem:[%s203 + $0x40] sm:$0xf]
                  %214 = vst [vmem:[%s204 + $0x10] sm:$0xf] %v213
                  %v215 = vld [vmem:[%s203 + $0x50] sm:$0xf]
                  %216 = vst [vmem:[%s204 + $0x14] sm:$0xf] %v215
                  %v217 = vld [vmem:[%s203 + $0x60] sm:$0xf]
                  %218 = vst [vmem:[%s204 + $0x18] sm:$0xf] %v217
                  %v219 = vld [vmem:[%s203 + $0x70] sm:$0xf]
                  %220 = vst [vmem:[%s204 + $0x1c] sm:$0xf] %v219
                  %v221 = vld [vmem:[%s203 + $0x80] sm:$0xf]
                  %222 = vst [vmem:[%s204 + $0x20] sm:$0xf] %v221
                  %v223 = vld [vmem:[%s203 + $0x90] sm:$0xf]
                  %224 = vst [vmem:[%s204 + $0x24] sm:$0xf] %v223
                  %v225 = vld [vmem:[%s203 + $0xa0] sm:$0xf]
                  %226 = vst [vmem:[%s204 + $0x28] sm:$0xf] %v225
                  %v227 = vld [vmem:[%s203 + $0xb0] sm:$0xf]
                  %228 = vst [vmem:[%s204 + $0x2c] sm:$0xf] %v227
                  %v229 = vld [vmem:[%s203 + $0xc0] sm:$0xf]
                  %230 = vst [vmem:[%s204 + $0x30] sm:$0xf] %v229
                  %v231 = vld [vmem:[%s203 + $0xd0] sm:$0xf]
                  %232 = vst [vmem:[%s204 + $0x34] sm:$0xf] %v231
                  %v233 = vld [vmem:[%s203 + $0xe0] sm:$0xf]
                  %234 = vst [vmem:[%s204 + $0x38] sm:$0xf] %v233
                  %v235 = vld [vmem:[%s203 + $0xf0] sm:$0xf]
                  %236 = vst [vmem:[%s204 + $0x3c] sm:$0xf] %v235
                $region59: #{output_wrapper_forward.1} parent=46 // loop_footer
                  %s202 = sadd.s32 1, %s198
                $region60: #{output_wrapper_forward.1} parent=46 // loop_footer_branch
                  %197 = sbr.rel target = $region56
                $region61: #{output_wrapper_forward.1} parent=46 // loop_exit
                  _
              $region47: #{output_wrapper_forward.1} parent=31 // pred_fallthru
                _
            $region32: #{output_wrapper_forward.1} parent=27 // pred_fallthru
              _
            // Predicated region
            $region33: #{output_wrapper_forward.1} parent=27 // pred_check
              _
            $region34: #{output_wrapper_forward.1} parent=27 // pred_check_branch
              %144 = sbr.rel (0) target = $region36
            $region35: #{output_wrapper_forward.1} parent=27 // pred_region
              loop: start=0, step=1, limit=1
              $region37: #{output_wrapper_forward.1} parent=35 // loop_pre_header
                _
              $region38: #{output_wrapper_forward.1} parent=35 // loop_header
                %s147 = sphi 0, %s151
                %p148 = scmp.ge.s32.totalorder %s147, 1
                %s152 = sphi %s138, %s138
                %s153 = sphi %s136, %s136
              $region39: #{output_wrapper_forward.1} parent=35 // loop_header_branch
                %150 = sbr.rel (%p148) target = $region43
              $region40: #{output_wrapper_forward.1} parent=35 // loop_body
                %v154 = vld [vmem:[%s152] sm:$0xf]
                %155 = vst [vmem:[%s153] sm:$0xf] %v154
                %v156 = vld [vmem:[%s152 + $0x10] sm:$0xf]
                %157 = vst [vmem:[%s153 + $0x4] sm:$0xf] %v156
                %v158 = vld [vmem:[%s152 + $0x20] sm:$0xf]
                %159 = vst [vmem:[%s153 + $0x8] sm:$0xf] %v158
                %v160 = vld [vmem:[%s152 + $0x30] sm:$0xf]
                %161 = vst [vmem:[%s153 + $0xc] sm:$0xf] %v160
                %v162 = vld [vmem:[%s152 + $0x40] sm:$0xf]
                %163 = vst [vmem:[%s153 + $0x10] sm:$0xf] %v162
                %v164 = vld [vmem:[%s152 + $0x50] sm:$0xf]
                %165 = vst [vmem:[%s153 + $0x14] sm:$0xf] %v164
                %v166 = vld [vmem:[%s152 + $0x60] sm:$0xf]
                %167 = vst [vmem:[%s153 + $0x18] sm:$0xf] %v166
                %v168 = vld [vmem:[%s152 + $0x70] sm:$0xf]
                %169 = vst [vmem:[%s153 + $0x1c] sm:$0xf] %v168
                %v170 = vld [vmem:[%s152 + $0x80] sm:$0xf]
                %171 = vst [vmem:[%s153 + $0x20] sm:$0xf] %v170
                %v172 = vld [vmem:[%s152 + $0x90] sm:$0xf]
                %173 = vst [vmem:[%s153 + $0x24] sm:$0xf] %v172
                %v174 = vld [vmem:[%s152 + $0xa0] sm:$0xf]
                %175 = vst [vmem:[%s153 + $0x28] sm:$0xf] %v174
                %v176 = vld [vmem:[%s152 + $0xb0] sm:$0xf]
                %177 = vst [vmem:[%s153 + $0x2c] sm:$0xf] %v176
                %v178 = vld [vmem:[%s152 + $0xc0] sm:$0xf]
                %179 = vst [vmem:[%s153 + $0x30] sm:$0xf] %v178
                %v180 = vld [vmem:[%s152 + $0xd0] sm:$0xf]
                %181 = vst [vmem:[%s153 + $0x34] sm:$0xf] %v180
                %v182 = vld [vmem:[%s152 + $0xe0] sm:$0xf]
                %183 = vst [vmem:[%s153 + $0x38] sm:$0xf] %v182
                %v184 = vld [vmem:[%s152 + $0xf0] sm:$0xf]
                %185 = vst [vmem:[%s153 + $0x3c] sm:$0xf] %v184
              $region41: #{output_wrapper_forward.1} parent=35 // loop_footer
                %s151 = sadd.s32 1, %s147
              $region42: #{output_wrapper_forward.1} parent=35 // loop_footer_branch
                %146 = sbr.rel target = $region38
              $region43: #{output_wrapper_forward.1} parent=35 // loop_exit
                _
            $region36: #{output_wrapper_forward.1} parent=27 // pred_fallthru
              _
          $region28: #{output_wrapper_forward.1} parent=23 // pred_fallthru
            _
          %237 = vnop
        $region24: #{output_wrapper_forward.1} parent=19 // pred_fallthru
          _
        // Predicated region
        $region62: #{output_wrapper_forward.1} parent=19 // pred_check
          %p238 = pneg %p76
        $region63: #{output_wrapper_forward.1} parent=19 // pred_check_branch
          %240 = sbr.rel (%p238) target = $region65
        $region64: #{output_wrapper_forward.1} parent=19 // pred_region
          %p241 = scmp.lt.s32.totalorder %s9, 3
          %s242 = scalar_select %p241, %s9, 3
          %s243 = scalar_lea.vmem %s2, %s242
        $region65: #{output_wrapper_forward.1} parent=19 // pred_fallthru
          _
      $region20: #{output_wrapper_forward.1} parent=5 // pred_fallthru
        _
      %p244 = scmp.le.s32.totalorder 1, %s9
      %p245 = scmp.lt.s32.totalorder %s9, 5
      %p246 = pnand %p244, %p245
      %p247 = pneg %p246
      // Predicated region
      $region66: #{output_wrapper_forward.1} parent=5 // pred_check
        _
      $region67: #{output_wrapper_forward.1} parent=5 // pred_check_branch
        %249 = sbr.rel (%p246) target = $region69
      $region68: #{output_wrapper_forward.1} parent=5 // pred_region
        %s250 = ssub.s32 %s9, 1
        %s251 = sand.u32 %s43, 1
        %s252 = sand.u32 %s43, 1
        %s253 = smul.addr %s252, 64
        %s254 = scalar_lea.vmem [#allocation2], %s253
        // Predicated region
        $region70: #{output_wrapper_forward.1} parent=68 // pred_check
          %p255 = pneg %p56
        $region71: #{output_wrapper_forward.1} parent=68 // pred_check_branch
          %257 = sbr.rel (%p255) target = $region73
        $region72: #{output_wrapper_forward.1} parent=68 // pred_region
          _
        $region73: #{output_wrapper_forward.1} parent=68 // pred_fallthru
          _
        %p258 = pneg %p30
        %p259 = pneg %p27
        %s260 = sand.u32 %s43, 1
        %s261 = sand.u32 %s43, 1
        %s262 = smul.addr %s261, 64
        %s263 = scalar_lea.vmem [#allocation2], %s262
        %p264 = pneg %p56
        %p265 = pneg %p53
        %p266 = scmp.lt.s32.totalorder %s14, 3
        %s267 = scalar_select %p266, %s14, 3
        %s268 = scalar_lea.vmem %s2, %s267
        %p269 = pneg %p82
        %p270 = pneg %p79
        %p271 = pneg %p108
        %p272 = pneg %p105
        %p273 = scmp.lt.s32.totalorder %s14, 3
        %s274 = scalar_select %p273, %s14, 3
        %s275 = smul.addr %s274, 8
        %s276 = scalar_lea.vmem %s3, %s275
        %p277 = scmp.lt.s32.totalorder %s14, 3
        %s278 = scalar_select %p277, %s14, 3
        %s279 = scalar_lea.vmem %s2, %s278
        %p280 = scmp.lt.s32.totalorder %s14, 3
        %s281 = scalar_select %p280, %s14, 3
        %s282 = smul.addr %s281, 8
        %s283 = scalar_lea.vmem %s3, %s282
        %v285 = vld [vmem:[%s0] sm:$0xf]
        %v286 = vld [vmem:[%s254] sm:$0xf]
        %v287 = vld [vmem:[%s254 + $0x4] sm:$0xf]
        %v288 = vld [vmem:[%s254 + $0x8] sm:$0xf]
        %v289 = vld [vmem:[%s254 + $0xc] sm:$0xf]
        %v290 = vld [vmem:[%s254 + $0x10] sm:$0xf]
        %v291 = vld [vmem:[%s254 + $0x14] sm:$0xf]
        %v292 = vld [vmem:[%s254 + $0x18] sm:$0xf]
        %v293 = vld [vmem:[%s254 + $0x1c] sm:$0xf]
        %v294 = vld [vmem:[%s254 + $0x20] sm:$0xf]
        %v295 = vld [vmem:[%s254 + $0x24] sm:$0xf]
        %v296 = vld [vmem:[%s254 + $0x28] sm:$0xf]
        %v297 = vld [vmem:[%s254 + $0x2c] sm:$0xf]
        %v298 = vld [vmem:[%s254 + $0x30] sm:$0xf]
        %v299 = vld [vmem:[%s254 + $0x34] sm:$0xf]
        %v300 = vld [vmem:[%s254 + $0x38] sm:$0xf]
        %v301 = vld [vmem:[%s254 + $0x3c] sm:$0xf]
        %v302 = vld [vmem:[%s279] sm:$0x1]
        %v304 = vlaneseq
        %v305 = vshrl.u32 %v304, 7
        %v306 = vsub.s32 0, %v305
        %v307 = vrot.slane %v302, %v306
        %v325 = vunpack.c.l.b16 %v286
        %v326 = vunpack.c.l.b16 %v287
        %v327 = vunpack.c.l.b16 %v288
        %v328 = vunpack.c.l.b16 %v289
        %v329 = vunpack.c.l.b16 %v290
        %v330 = vunpack.c.l.b16 %v291
        %v331 = vunpack.c.l.b16 %v292
        %v332 = vunpack.c.l.b16 %v293
        %v333 = vunpack.c.l.b16 %v294
        %v334 = vunpack.c.l.b16 %v295
        %v335 = vunpack.c.l.b16 %v296
        %v336 = vunpack.c.l.b16 %v297
        %v337 = vunpack.c.l.b16 %v298
        %v338 = vunpack.c.l.b16 %v299
        %v339 = vunpack.c.l.b16 %v300
        %v340 = vunpack.c.l.b16 %v301
        %v341 = vpack.c.b16 %v326, %v325
        %v342 = vpack.c.b16 %v328, %v327
        %v343 = vpack.c.b16 %v330, %v329
        %v344 = vpack.c.b16 %v332, %v331
        %v345 = vpack.c.b16 %v334, %v333
        %v346 = vpack.c.b16 %v336, %v335
        %v347 = vpack.c.b16 %v338, %v337
        %v348 = vpack.c.b16 %v340, %v339
        %357 = vmatprep.subr.bf16.mxu0 0
        %358 = vmatpush1.bf16.msra.mxu0 %v341
        %359 = vmatprep.subr.bf16.mxu0 0
        %360 = vmatpush1.bf16.msra.mxu0 %v342
        %361 = vmatprep.subr.bf16.mxu0 0
        %362 = vmatpush1.bf16.msra.mxu0 %v343
        %363 = vmatprep.subr.bf16.mxu0 0
        %364 = vmatpush1.bf16.msra.mxu0 %v344
        %365 = vmatprep.subr.bf16.mxu0 0
        %366 = vmatpush1.bf16.msra.mxu0 %v345
        %367 = vmatprep.subr.bf16.mxu0 0
        %368 = vmatpush1.bf16.msra.mxu0 %v346
        %369 = vmatprep.subr.bf16.mxu0 0
        %370 = vmatpush1.bf16.msra.mxu0 %v347
        %371 = vmatprep.subr.bf16.mxu0 0
        %372 = vmatpush1.bf16.msra.mxu0 %v348
        %373 = vmatprep.subr.bf16.mxu0 0
        %374 = vmatpush1.bf16.msra.mxu0 0
        %375 = vmatprep.subr.bf16.mxu0 0
        %376 = vmatpush1.bf16.msra.mxu0 0
        %377 = vmatprep.subr.bf16.mxu0 0
        %378 = vmatpush1.bf16.msra.mxu0 0
        %379 = vmatprep.subr.bf16.mxu0 0
        %380 = vmatpush1.bf16.msra.mxu0 0
        %381 = vmatprep.subr.bf16.mxu0 0
        %382 = vmatpush1.bf16.msra.mxu0 0
        %383 = vmatprep.subr.bf16.mxu0 0
        %384 = vmatpush1.bf16.msra.mxu0 0
        %385 = vmatprep.subr.bf16.mxu0 0
        %386 = vmatpush1.bf16.msra.mxu0 0
        %387 = vmatprep.subr.bf16.mxu0 0
        %388 = vmatpush1.bf16.msra.mxu0 0
        %389 = vmatprep.mubr.bf16.mxu0 0
        %390 = vmatmul.mubr.bf16.gmra.mrb[0].mxu0 %v285
        %v391 = vpop.f32.mrb[0].mxu0
        %v392 = vadd.f32 %v307, %v391
        %v393 = vpop.f32.mrb[0].mxu0
        %v394 = vpop.f32.mrb[0].mxu0
        %v395 = vpop.f32.mrb[0].mxu0
        %396 = vdwg.mxu0
        %397 = vst [vmem:[%s283] sm:$0xff] %v392
        %p398 = scmp.lt.s32.totalorder %s14, 3
        %s399 = scalar_select %p398, %s14, 3
        %s400 = smul.addr %s399, 8
        %s401 = scalar_lea.vmem %s3, %s400
        // Predicated region
        $region74: #{output_wrapper_forward.1} parent=68 // pred_check
          %p402 = pneg %p105
        $region75: #{output_wrapper_forward.1} parent=68 // pred_check_branch
          %404 = sbr.rel (%p402) target = $region77
        $region76: #{output_wrapper_forward.1} parent=68 // pred_region
          _
        $region77: #{output_wrapper_forward.1} parent=68 // pred_fallthru
          _
      $region69: #{output_wrapper_forward.1} parent=5 // pred_fallthru
        _
      %p405 = scmp.le.s32.totalorder 2, %s9
      // Predicated region
      $region78: #{output_wrapper_forward.1} parent=5 // pred_check
        %p406 = pneg %p405
      $region79: #{output_wrapper_forward.1} parent=5 // pred_check_branch
        %408 = sbr.rel (%p406) target = $region81
      $region80: #{output_wrapper_forward.1} parent=5 // pred_region
        %s409 = ssub.s32 %s9, 2
        // Predicated region
        $region82: #{output_wrapper_forward.1} parent=80 // pred_check
          %p410 = pneg %p111
        $region83: #{output_wrapper_forward.1} parent=80 // pred_check_branch
          %412 = sbr.rel (%p410) target = $region85
        $region84: #{output_wrapper_forward.1} parent=80 // pred_region
          %p413 = scmp.lt.s32.totalorder %s15, 3
          %s414 = scalar_select %p413, %s15, 3
          %s415 = smul.addr %s414, 8
          %s416 = scalar_lea.vmem %s3, %s415
        $region85: #{output_wrapper_forward.1} parent=80 // pred_fallthru
          _
      $region81: #{output_wrapper_forward.1} parent=5 // pred_fallthru
        _
    $region6: #{output_wrapper_forward.1} parent=1 // loop_footer
      %s13 = sadd.s32 1, %s9
    $region7: #{output_wrapper_forward.1} parent=1 // loop_footer_branch
      %8 = sbr.rel target = $region3
    $region8: #{output_wrapper_forward.1} parent=1 // loop_exit
      _

</llo_original>
